<compile_context>
chip_gen: v5e
topology: v5e:2x2
jax: 0.10.0
libtpu: 0.0.40
codegen_flags: <defaults>
</compile_context>

<pallas_src>
import math
import numpy as np
import jax
import jax.numpy as jnp
from jax.experimental import pallas as pl
from jax.experimental.pallas import tpu as pltpu


# TODO(synk): original get_padd() was not provided; using standard "same"-style
# padding (which is zero for the kernel==stride config exercised below).
def get_padd(dim, k, s):
    n = math.ceil(dim / s)
    pad_total = max((n - 1) * s + k - dim, 0)
    return int(math.ceil(pad_total / 2))


def _round_up(a, m):
    return (a + m - 1) // m * m


def encoder_kernel(x_ref, w1_ref, b1_ref, w2_ref, b2_ref, out_ref):
    """One batch tile, fully fused forward pass (all operands in VMEM).

    x_ref:   (TB, D)   flattened input images
    w1_ref:  (D, N)    conv folded into a dense matrix (channel-major columns)
    b1_ref:  (1, N)    conv bias broadcast over the flattened conv output
    w2_ref:  (N, Mp)   fused [masked-linear | sd-linear | zero-pad] weight
    b2_ref:  (1, Mp)   fused bias (zero in the padded lanes)
    out_ref: (TB, Mp)  concatenated (x_masked, x_sd) with zero lane padding
    """
    # conv + bias + ReLU  (single big MXU matmul, VPU epilogue)
    h = jnp.dot(x_ref[...], w1_ref[...], preferred_element_type=jnp.float32)
    h = jnp.maximum(h + b1_ref[...], 0.0)
    # both linear heads fused into one matmul; single full-width, unmasked store
    out = jnp.dot(h, w2_ref[...], preferred_element_type=jnp.float32) + b2_ref[...]
    out_ref[...] = out.astype(out_ref.dtype)


class EncoderSubnetsPallas:
    MAX_BATCH_TILE = 1024  # rows / grid step: ~1 MiB of input per DMA buffer

    def __init__(self, embed_dim, latent_disc, latent_cont,
                 kernel_size=(4, 4), stride=(4, 4), hidden_channels=8, x_dim=16,
                 key=jax.random.PRNGKey(0)):
        self.embed_dim = embed_dim
        self.latent_disc = latent_disc
        self.latent_cont = latent_cont
        self.latent_dim = latent_disc + 2 * latent_cont
        self.hidden_ch = hidden_channels
        self.x_dim = x_dim
        self.y_dim = embed_dim // x_dim
        self.kernel_size = tuple(kernel_size)
        self.stride = tuple(stride)
        kx, ky = self.kernel_size
        sx, sy = self.stride
        self.padding = (get_padd(self.x_dim, kx, sx), get_padd(self.y_dim, ky, sy))
        self.nx = (self.x_dim + 2 * self.padding[0] - kx) // sx + 1
        self.ny = (self.y_dim + 2 * self.padding[1] - ky) // sy + 1
        self.P = self.nx * self.ny
        self.N = self.P * self.hidden_ch
        self.nr_masked_units = latent_disc + latent_cont

        # ---- deterministic parameter init (PyTorch-default-style uniform) ----
        k = jax.random.split(key, 6)
        C, K, N = self.hidden_ch, kx * ky, self.N
        M1, M2 = self.nr_masked_units, self.latent_cont
        bconv = 1.0 / math.sqrt(K)
        blin = 1.0 / math.sqrt(N)
        self.conv_w = jax.random.uniform(k[0], (C, 1, kx, ky), jnp.float32, -bconv, bconv)
        self.conv_b = jax.random.uniform(k[1], (C,), jnp.float32, -bconv, bconv)
        self.wm = jax.random.uniform(k[2], (M1, N), jnp.float32, -blin, blin)
        self.bm = jax.random.uniform(k[3], (M1,), jnp.float32, -blin, blin)
        self.ws = jax.random.uniform(k[4], (M2, N), jnp.float32, -blin, blin)
        self.bs = jax.random.uniform(k[5], (M2,), jnp.float32, -blin, blin)

        # TODO(synk): MaskedLinear definition was not provided; assuming a
        # block-diagonal subnet mask (each of the M1 outputs sees its own
        # contiguous slice of the N conv features in PyTorch's channel-major
        # feature order).
        mask = np.zeros((M1, N), dtype=np.float32)
        for i, g in enumerate(np.array_split(np.arange(N), M1)):
            mask[i, g] = 1.0
        self.mask = jnp.asarray(mask)

        # ---- kernel-side parameter layout (init-time parameter plumbing) ----
        # (1) Fold the conv into a dense (D, N) matrix W_big with
        #     W_big[d, c*P + p] = conv_w[c, 0, a, b]  whenever input pixel d is
        #     tap (a, b) of output position p (zero-padding pixels contribute
        #     nothing).  Output columns are already in PyTorch's channel-major
        #     flatten order, so the head weights need NO permutation.
        D = self.embed_dim
        px, py = self.padding
        w_np = np.asarray(self.conv_w)                       # (C, 1, kx, ky)
        c_cols = np.arange(C) * self.P                       # channel column offsets
        w_big = np.zeros((D, N), dtype=np.float32)
        for i in range(self.nx):
            for j in range(self.ny):
                p = i * self.ny + j
                for a in range(kx):
                    ix = i * sx - px + a
                    if ix < 0 or ix >= self.x_dim:
                        continue
                    for b in range(ky):
                        iy = j * sy - py + b
                        if iy < 0 or iy >= self.y_dim:
                            continue
                        d = ix * self.y_dim + iy
                        w_big[d, c_cols + p] += w_np[:, 0, a, b]
        self.w1_k = jnp.asarray(w_big)                                      # (D, N)
        self.b1_k = jnp.asarray(np.repeat(np.asarray(self.conv_b), self.P)  # (1, N)
                                ).reshape(1, N)

        # (2) Fuse the two heads: [masked-linear ; sd-linear], and zero-pad the
        #     output dimension to a lane-dense width (multiple of 128) so the
        #     kernel's output store is unmasked and the writeback DMA is dense.
        M = self.latent_dim
        Mp = _round_up(M, 128)
        self.M_pad = Mp
        w2 = np.concatenate([np.asarray(self.wm) * np.asarray(self.mask),
                             np.asarray(self.ws)], axis=0)                  # (M, N)
        w2p = np.zeros((N, Mp), dtype=np.float32)
        w2p[:, :M] = w2.T
        b2p = np.zeros((1, Mp), dtype=np.float32)
        b2p[0, :M] = np.concatenate([np.asarray(self.bm), np.asarray(self.bs)])
        self.w2_k = jnp.asarray(w2p)                                        # (N, Mp)
        self.b2_k = jnp.asarray(b2p)                                        # (1, Mp)

        # trace/compile the pallas plumbing once per batch shape
        self._forward = jax.jit(self._forward_impl)

    def _forward_impl(self, x):
        x = x.astype(jnp.float32)
        B = x.shape[0]
        D, N = self.embed_dim, self.N
        M, Mp = self.latent_dim, self.M_pad

        # Batch tiling: pad B to a multiple of the tile so every grid step is a
        # full, aligned block (cheap for the tiny test batch; zero-cost when B
        # is already a tile multiple).
        B8 = _round_up(max(B, 1), 8)
        tb = min(self.MAX_BATCH_TILE, B8)
        Bp = _round_up(B8, tb)
        if Bp != B:
            x = jnp.pad(x, ((0, Bp - B), (0, 0)))
        grid = (Bp // tb,)

        flops = 2 * Bp * (D * N + N * Mp)
        bytes_accessed = 4 * (Bp * D + Bp * Mp + D * N + N + N * Mp + Mp)

        out = pl.pallas_call(
            encoder_kernel,
            out_shape=jax.ShapeDtypeStruct((Bp, Mp), jnp.float32),
            grid_spec=pltpu.PrefetchScalarGridSpec(
                num_scalar_prefetch=0,
                grid=grid,
                in_specs=[
                    pl.BlockSpec((tb, D), lambda b: (b, 0)),    # batch tile of x
                    pl.BlockSpec((D, N), lambda b: (0, 0)),     # resident weights
                    pl.BlockSpec((1, N), lambda b: (0, 0)),
                    pl.BlockSpec((N, Mp), lambda b: (0, 0)),
                    pl.BlockSpec((1, Mp), lambda b: (0, 0)),
                ],
                out_specs=pl.BlockSpec((tb, Mp), lambda b: (b, 0)),
            ),
            compiler_params=pltpu.CompilerParams(
                dimension_semantics=("parallel",),          # v7x: shard over 2 TCs
                vmem_limit_bytes=32 * 1024 * 1024,          # explicit VMEM budget
            ),
            cost_estimate=pl.CostEstimate(
                flops=flops, transcendentals=0, bytes_accessed=bytes_accessed),
        )(x, self.w1_k, self.b1_k, self.w2_k, self.b2_k)

        # drop the batch padding and the zero lane-padding of the fused head
        return out[:B, :M]

    def forward(self, x):
        return self._forward(x)

    # ---- plain-JAX reference (mirrors PyTorch semantics exactly) ----
    def reference(self, x):
        B = x.shape[0]
        xi = x.reshape(B, 1, self.x_dim, self.y_dim)
        conv = jax.lax.conv_general_dilated(
            xi, self.conv_w, window_strides=self.stride,
            padding=[(self.padding[0], self.padding[0]),
                     (self.padding[1], self.padding[1])],
            dimension_numbers=("NCHW", "OIHW", "NCHW"))
        conv = conv + self.conv_b.reshape(1, -1, 1, 1)
        f = jnp.maximum(conv.reshape(B, -1), 0.0)            # channel-major N
        xm = f @ (self.wm * self.mask).T + self.bm
        xs = f @ self.ws.T + self.bs
        return jnp.concatenate([xm, xs], axis=1)


if __name__ == "__main__":
    # small config: embed_dim=256 -> 16x16 image, conv 4x4 / stride 4 -> 4x4x8 = 128
    key = jax.random.PRNGKey(0)
    k_params, k_x = jax.random.split(key)
    enc = EncoderSubnetsPallas(embed_dim=256, latent_disc=3, latent_cont=2,
                               kernel_size=(4, 4), stride=(4, 4),
                               hidden_channels=8, x_dim=16, key=k_params)
    x = jax.random.normal(k_x, (2, 256), dtype=jnp.float32)

    out = jax.block_until_ready(enc.forward(x))
    ref = jax.block_until_ready(enc.reference(x))

    assert out.shape == (2, enc.latent_dim), out.shape
    # Tolerance is set by TPU's default reduced-precision (bf16-pass) MXU
    # matmul/conv behavior in BOTH paths, not by the kernel formulation
    # (the folded conv matrix / padded head only add exact zeros).
    np.testing.assert_allclose(np.asarray(out), np.asarray(ref),
                               rtol=1e-2, atol=1e-2)
    print("KERNEL_OK")
</pallas_src>

<mosaic_0001>
module attributes {stable_mosaic.version = 11 : i64} {
  func.func @encoder_kernel(%arg0: i32, %arg1: memref<8x256xf32, #tpu.memory_space<vmem>>, %arg2: memref<256x128xf32, #tpu.memory_space<vmem>>, %arg3: memref<1x128xf32, #tpu.memory_space<vmem>>, %arg4: memref<128x128xf32, #tpu.memory_space<vmem>>, %arg5: memref<1x128xf32, #tpu.memory_space<vmem>>, %arg6: memref<8x128xf32, #tpu.memory_space<vmem>>) attributes {dimension_semantics = [#tpu.dimension_semantics<parallel>], iteration_bounds = array<i64: 1>, scalar_prefetch = 0 : i64, scratch_operands = 0 : i64, tpu.core_type = #tpu.core_type<tc>, window_params = [{transform_indices = @transform_0, window_bounds = array<i64: 8, 256>}, {pipeline_mode = #tpu.pipeline_mode<synchronous>, transform_indices = @transform_1, window_bounds = array<i64: 256, 128>}, {pipeline_mode = #tpu.pipeline_mode<synchronous>, transform_indices = @transform_2, window_bounds = array<i64: 1, 128>}, {pipeline_mode = #tpu.pipeline_mode<synchronous>, transform_indices = @transform_3, window_bounds = array<i64: 128, 128>}, {pipeline_mode = #tpu.pipeline_mode<synchronous>, transform_indices = @transform_4, window_bounds = array<i64: 1, 128>}, {transform_indices = @transform_5, window_bounds = array<i64: 8, 128>}]} {
    %c0 = arith.constant 0 : index
    %c0_0 = arith.constant 0 : index
    %0 = vector.load %arg1[%c0, %c0_0] : memref<8x256xf32, #tpu.memory_space<vmem>>, vector<8x256xf32>
    %c0_1 = arith.constant 0 : index
    %c0_2 = arith.constant 0 : index
    %1 = vector.load %arg2[%c0_1, %c0_2] : memref<256x128xf32, #tpu.memory_space<vmem>>, vector<256x128xf32>
    %cst = arith.constant dense<0.000000e+00> : vector<8x128xf32>
    %2 = tpu.matmul %0, %1, %cst {dimension_numbers = #tpu.dot_dimension_numbers<[1], [0], [0], [1], [0, 0, 1, 1], [], []>} : vector<8x256xf32>, vector<256x128xf32>, vector<8x128xf32> -> vector<8x128xf32>
    %c0_3 = arith.constant 0 : index
    %c0_4 = arith.constant 0 : index
    %3 = vector.load %arg3[%c0_3, %c0_4] : memref<1x128xf32, #tpu.memory_space<vmem>>, vector<1x128xf32>
    %4 = vector.broadcast %3 : vector<1x128xf32> to vector<8x128xf32>
    %5 = arith.addf %2, %4 : vector<8x128xf32>
    %cst_5 = arith.constant 0.000000e+00 : f32
    %6 = vector.broadcast %cst_5 : f32 to vector<8x128xf32>
    %7 = arith.maximumf %5, %6 : vector<8x128xf32>
    %c0_6 = arith.constant 0 : index
    %c0_7 = arith.constant 0 : index
    %8 = vector.load %arg4[%c0_6, %c0_7] : memref<128x128xf32, #tpu.memory_space<vmem>>, vector<128x128xf32>
    %cst_8 = arith.constant dense<0.000000e+00> : vector<8x128xf32>
    %9 = tpu.matmul %7, %8, %cst_8 {dimension_numbers = #tpu.dot_dimension_numbers<[1], [0], [0], [1], [0, 0, 1, 1], [], []>} : vector<8x128xf32>, vector<128x128xf32>, vector<8x128xf32> -> vector<8x128xf32>
    %c0_9 = arith.constant 0 : index
    %c0_10 = arith.constant 0 : index
    %10 = vector.load %arg5[%c0_9, %c0_10] : memref<1x128xf32, #tpu.memory_space<vmem>>, vector<1x128xf32>
    %11 = vector.broadcast %10 : vector<1x128xf32> to vector<8x128xf32>
    %12 = arith.addf %9, %11 : vector<8x128xf32>
    %c0_11 = arith.constant 0 : index
    %c0_12 = arith.constant 0 : index
    %13 = vector.load %arg6[%c0_11, %c0_12] : memref<8x128xf32, #tpu.memory_space<vmem>>, vector<8x128xf32>
    tpu.vector_store %arg6[%c0_11, %c0_12], %12 {strides = array<i32>} : memref<8x128xf32, #tpu.memory_space<vmem>>, vector<8x128xf32>,
    return
  }
  func.func @transform_0(%arg0: i32) -> (i32, i32) {
    %c0_i32 = arith.constant 0 : i32
    %c0_i32_0 = arith.constant 0 : i32
    return %arg0, %c0_i32 : i32, i32
  }
  func.func @transform_1(%arg0: i32) -> (i32, i32) {
    %c0_i32 = arith.constant 0 : i32
    %c0_i32_0 = arith.constant 0 : i32
    %c0_i32_1 = arith.constant 0 : i32
    return %c0_i32, %c0_i32_0 : i32, i32
  }
  func.func @transform_2(%arg0: i32) -> (i32, i32) {
    %c0_i32 = arith.constant 0 : i32
    %c0_i32_0 = arith.constant 0 : i32
    %c0_i32_1 = arith.constant 0 : i32
    return %c0_i32, %c0_i32_0 : i32, i32
  }
  func.func @transform_3(%arg0: i32) -> (i32, i32) {
    %c0_i32 = arith.constant 0 : i32
    %c0_i32_0 = arith.constant 0 : i32
    %c0_i32_1 = arith.constant 0 : i32
    return %c0_i32, %c0_i32_0 : i32, i32
  }
  func.func @transform_4(%arg0: i32) -> (i32, i32) {
    %c0_i32 = arith.constant 0 : i32
    %c0_i32_0 = arith.constant 0 : i32
    %c0_i32_1 = arith.constant 0 : i32
    return %c0_i32, %c0_i32_0 : i32, i32
  }
  func.func @transform_5(%arg0: i32) -> (i32, i32) {
    %c0_i32 = arith.constant 0 : i32
    %c0_i32_0 = arith.constant 0 : i32
    return %arg0, %c0_i32 : i32, i32
  }
}

</mosaic_0001>

<llo_original>
// kernel: _forward_impl.1
$region0: #{_forward_impl.1}
  #allocation0 [shape = 'u32[]', space=smem, size = 0x4, offset = 0x4, fixed_abs, tag = 'smem constant byte address 0x4 - core index']
  #allocation1 [shape = 'u32[72,128]{1,0:T(1,128)}', space=vmem, size = 0x9000, scoped, tag = 'internal scratch']
  %s0 = inlined_call_operand.vmem [shape: f32[8,256], index: 0, kind: input, shape index: {}]
  %s1 = inlined_call_operand.hbm [shape: f32[256,128], index: 1, kind: input, shape index: {}]
  %s2 = inlined_call_operand.vmem [shape: f32[1,128], index: 2, kind: input, shape index: {}]
  %s3 = inlined_call_operand.hbm [shape: f32[128,128], index: 3, kind: input, shape index: {}]
  %s4 = inlined_call_operand.vmem [shape: f32[1,128], index: 4, kind: input, shape index: {}]
  %s5 = inlined_call_operand.vmem [shape: f32[8,128], index: 5, kind: output, shape index: {}]
  %s6 = sld [smem:[#allocation0]]
  $region38: #{_forward_impl.1} parent=0
    _
  %s8 = ssub.s32 1, %s6
  %s9 = scalar_select 0, %s8, %s6
  $region1: #{_forward_impl.1} parent=0
    #allocation2 [shape = 'u8[131072]{0}', space=vmem, size = 0x20000, scoped, tag = 'input window, operand 1, single buffered']
    #allocation3 [shape = 's32[1]{0}', space=sflag, size = 0x4, scoped, tag = 'scoped memory for _forward_impl.1']
    #allocation4 [shape = 'u8[65536]{0}', space=vmem, size = 0x10000, scoped, tag = 'input window, operand 3, single buffered']
    #allocation5 [shape = 's32[1]{0}', space=sflag, size = 0x4, scoped, tag = 'scoped memory for _forward_impl.1']
    %10 = vsyncpa [#allocation3], 0
    %11 = vsyncpa [#allocation5], 0
    // Predicated region
    $region2: #{_forward_impl.1} parent=1 // pred_check
      _
    $region3: #{_forward_impl.1} parent=1 // pred_check_branch
      %13 = sbr.rel (0) target = $region5
    $region4: #{_forward_impl.1} parent=1 // pred_region
      _
    $region5: #{_forward_impl.1} parent=1 // pred_fallthru
      _
    // Predicated region
    $region6: #{_forward_impl.1} parent=1 // pred_check
      _
    $region7: #{_forward_impl.1} parent=1 // pred_check_branch
      %15 = sbr.rel (0) target = $region9
    $region8: #{_forward_impl.1} parent=1 // pred_region
      %17 = vsyncadd [#allocation3], 0
      %s18 = sshll.u32 %s1, 4
      %s19 = int_to_ptr.hbm [resolvable:$true] %s18
      %s20 = sshll.u32 [#allocation2], 4
      %s21 = int_to_ptr.vmem [resolvable:$true] %s20
      %26 = dma.hbm_to_vmem [thread:$0]  %s19, 4096, %s21, [#allocation3], 128, 128, 8
    $region9: #{_forward_impl.1} parent=1 // pred_fallthru
      _
    // Predicated region
    $region10: #{_forward_impl.1} parent=1 // pred_check
      _
    $region11: #{_forward_impl.1} parent=1 // pred_check_branch
      %28 = sbr.rel (0) target = $region13
    $region12: #{_forward_impl.1} parent=1 // pred_region
      _
    $region13: #{_forward_impl.1} parent=1 // pred_fallthru
      _
    // Predicated region
    $region14: #{_forward_impl.1} parent=1 // pred_check
      _
    $region15: #{_forward_impl.1} parent=1 // pred_check_branch
      %30 = sbr.rel (0) target = $region17
    $region16: #{_forward_impl.1} parent=1 // pred_region
      %32 = vsyncadd [#allocation5], 0
      %s33 = sshll.u32 %s3, 4
      %s34 = int_to_ptr.hbm [resolvable:$true] %s33
      %s35 = sshll.u32 [#allocation4], 4
      %s36 = int_to_ptr.vmem [resolvable:$true] %s35
      %41 = dma.hbm_to_vmem [thread:$0]  %s34, 2048, %s36, [#allocation5], 128, 128, 8
    $region17: #{_forward_impl.1} parent=1 // pred_fallthru
      _
    // Predicated region
    $region18: #{_forward_impl.1} parent=1 // pred_check
      _
    $region19: #{_forward_impl.1} parent=1 // pred_check_branch
      %43 = sbr.rel (0) target = $region21
    $region20: #{_forward_impl.1} parent=1 // pred_region
      _
    $region21: #{_forward_impl.1} parent=1 // pred_fallthru
      _
    // Predicated region
    $region22: #{_forward_impl.1} parent=1 // pred_check
      _
    $region23: #{_forward_impl.1} parent=1 // pred_check_branch
      %45 = sbr.rel (0) target = $region25
    $region24: #{_forward_impl.1} parent=1 // pred_region
      %47 = dma.done [#allocation3], 4096
    $region25: #{_forward_impl.1} parent=1 // pred_fallthru
      _
    // Predicated region
    $region26: #{_forward_impl.1} parent=1 // pred_check
      _
    $region27: #{_forward_impl.1} parent=1 // pred_check_branch
      %49 = sbr.rel (0) target = $region29
    $region28: #{_forward_impl.1} parent=1 // pred_region
      %51 = dma.done [#allocation5], 2048
    $region29: #{_forward_impl.1} parent=1 // pred_fallthru
      _
    %v52 = vld [vmem:[%s0] sm:$0xff]
    %v53 = vld [vmem:[%s0 + $0x8] sm:$0xff]
    %v54 = vld [vmem:[#allocation2] sm:$0xff]
    %v55 = vld [vmem:[#allocation2 + $0x8] sm:$0xff]
    %v56 = vld [vmem:[#allocation2 + $0x10] sm:$0xff]
    %v57 = vld [vmem:[#allocation2 + $0x18] sm:$0xff]
    %v58 = vld [vmem:[#allocation2 + $0x20] sm:$0xff]
    %v59 = vld [vmem:[#allocation2 + $0x28] sm:$0xff]
    %v60 = vld [vmem:[#allocation2 + $0x30] sm:$0xff]
    %v61 = vld [vmem:[#allocation2 + $0x38] sm:$0xff]
    %v62 = vld [vmem:[#allocation2 + $0x40] sm:$0xff]
    %v63 = vld [vmem:[#allocation2 + $0x48] sm:$0xff]
    %v64 = vld [vmem:[#allocation2 + $0x50] sm:$0xff]
    %v65 = vld [vmem:[#allocation2 + $0x58] sm:$0xff]
    %v66 = vld [vmem:[#allocation2 + $0x60] sm:$0xff]
    %v67 = vld [vmem:[#allocation2 + $0x68] sm:$0xff]
    %v68 = vld [vmem:[#allocation2 + $0x70] sm:$0xff]
    %v69 = vld [vmem:[#allocation2 + $0x78] sm:$0xff]
    %v70 = vld [vmem:[#allocation2 + $0x80] sm:$0xff]
    %v71 = vld [vmem:[#allocation2 + $0x88] sm:$0xff]
    %v72 = vld [vmem:[#allocation2 + $0x90] sm:$0xff]
    %v73 = vld [vmem:[#allocation2 + $0x98] sm:$0xff]
    %v74 = vld [vmem:[#allocation2 + $0xa0] sm:$0xff]
    %v75 = vld [vmem:[#allocation2 + $0xa8] sm:$0xff]
    %v76 = vld [vmem:[#allocation2 + $0xb0] sm:$0xff]
    %v77 = vld [vmem:[#allocation2 + $0xb8] sm:$0xff]
    %v78 = vld [vmem:[#allocation2 + $0xc0] sm:$0xff]
    %v79 = vld [vmem:[#allocation2 + $0xc8] sm:$0xff]
    %v80 = vld [vmem:[#allocation2 + $0xd0] sm:$0xff]
    %v81 = vld [vmem:[#allocation2 + $0xd8] sm:$0xff]
    %v82 = vld [vmem:[#allocation2 + $0xe0] sm:$0xff]
    %v83 = vld [vmem:[#allocation2 + $0xe8] sm:$0xff]
    %v84 = vld [vmem:[#allocation2 + $0xf0] sm:$0xff]
    %v85 = vld [vmem:[#allocation2 + $0xf8] sm:$0xff]
    %v86 = vld [vmem:[%s2] sm:$0x1]
    %v88 = vperm.slane %v86, 0
    %90 = vmatpush.msra.mxu0 %v69
    %91 = vmatpush.msra.mxu0 %v68
    %92 = vmatpush.msra.mxu0 %v67
    %93 = vmatpush.msra.mxu0 %v66
    %94 = vmatpush.msra.mxu0 %v65
    %95 = vmatpush.msra.mxu0 %v64
    %96 = vmatpush.msra.mxu0 %v63
    %97 = vmatpush.msra.mxu0 %v62
    %98 = vmatpush.msra.mxu0 %v61
    %99 = vmatpush.msra.mxu0 %v60
    %100 = vmatpush.msra.mxu0 %v59
    %101 = vmatpush.msra.mxu0 %v58
    %102 = vmatpush.msra.mxu0 %v57
    %103 = vmatpush.msra.mxu0 %v56
    %104 = vmatpush.msra.mxu0 %v55
    %105 = vmatpush.msra.mxu0 %v54
    %106 = vmatmul.f32.gmra.mxu0 %v52
    %v107 = vpop.f32.mrf.mxu0
    %v108 = vadd.f32 %v88, %v107
    %109 = vdwg.mxu0
    %110 = vmatpush.msra.mxu0 %v85
    %111 = vmatpush.msra.mxu0 %v84
    %112 = vmatpush.msra.mxu0 %v83
    %113 = vmatpush.msra.mxu0 %v82
    %114 = vmatpush.msra.mxu0 %v81
    %115 = vmatpush.msra.mxu0 %v80
    %116 = vmatpush.msra.mxu0 %v79
    %117 = vmatpush.msra.mxu0 %v78
    %118 = vmatpush.msra.mxu0 %v77
    %119 = vmatpush.msra.mxu0 %v76
    %120 = vmatpush.msra.mxu0 %v75
    %121 = vmatpush.msra.mxu0 %v74
    %122 = vmatpush.msra.mxu0 %v73
    %123 = vmatpush.msra.mxu0 %v72
    %124 = vmatpush.msra.mxu0 %v71
    %125 = vmatpush.msra.mxu0 %v70
    %126 = vmatmul.f32.gmra.mxu0 %v53
    %v127 = vpop.f32.mrf.mxu0
    %v128 = vadd.f32 %v108, %v127
    %129 = vdwg.mxu0
    %v130 = vmax.f32 %v128, 0.0
    %v131 = vld [vmem:[#allocation4] sm:$0xff]
    %v132 = vld [vmem:[#allocation4 + $0x8] sm:$0xff]
    %v133 = vld [vmem:[#allocation4 + $0x10] sm:$0xff]
    %v134 = vld [vmem:[#allocation4 + $0x18] sm:$0xff]
    %v135 = vld [vmem:[#allocation4 + $0x20] sm:$0xff]
    %v136 = vld [vmem:[#allocation4 + $0x28] sm:$0xff]
    %v137 = vld [vmem:[#allocation4 + $0x30] sm:$0xff]
    %v138 = vld [vmem:[#allocation4 + $0x38] sm:$0xff]
    %v139 = vld [vmem:[#allocation4 + $0x40] sm:$0xff]
    %v140 = vld [vmem:[#allocation4 + $0x48] sm:$0xff]
    %v141 = vld [vmem:[#allocation4 + $0x50] sm:$0xff]
    %v142 = vld [vmem:[#allocation4 + $0x58] sm:$0xff]
    %v143 = vld [vmem:[#allocation4 + $0x60] sm:$0xff]
    %v144 = vld [vmem:[#allocation4 + $0x68] sm:$0xff]
    %v145 = vld [vmem:[#allocation4 + $0x70] sm:$0xff]
    %v146 = vld [vmem:[#allocation4 + $0x78] sm:$0xff]
    %v147 = vld [vmem:[%s4] sm:$0x1]
    %v149 = vperm.slane %v147, 0
    %151 = vmatpush.msra.mxu0 %v146
    %152 = vmatpush.msra.mxu0 %v145
    %153 = vmatpush.msra.mxu0 %v144
    %154 = vmatpush.msra.mxu0 %v143
    %155 = vmatpush.msra.mxu0 %v142
    %156 = vmatpush.msra.mxu0 %v141
    %157 = vmatpush.msra.mxu0 %v140
    %158 = vmatpush.msra.mxu0 %v139
    %159 = vmatpush.msra.mxu0 %v138
    %160 = vmatpush.msra.mxu0 %v137
    %161 = vmatpush.msra.mxu0 %v136
    %162 = vmatpush.msra.mxu0 %v135
    %163 = vmatpush.msra.mxu0 %v134
    %164 = vmatpush.msra.mxu0 %v133
    %165 = vmatpush.msra.mxu0 %v132
    %166 = vmatpush.msra.mxu0 %v131
    %167 = vmatmul.f32.gmra.mxu0 %v130
    %v168 = vpop.f32.mrf.mxu0
    %v169 = vadd.f32 %v149, %v168
    %170 = vdwg.mxu0
    %171 = vst [vmem:[%s5] sm:$0xff] %v169
    // Predicated region
    $region30: #{_forward_impl.1} parent=1 // pred_check
      _
    $region31: #{_forward_impl.1} parent=1 // pred_check_branch
      %173 = sbr.rel (0) target = $region33
    $region32: #{_forward_impl.1} parent=1 // pred_region
      _
    $region33: #{_forward_impl.1} parent=1 // pred_fallthru
      _
    // Predicated region
    $region34: #{_forward_impl.1} parent=1 // pred_check
      _
    $region35: #{_forward_impl.1} parent=1 // pred_check_branch
      %175 = sbr.rel (0) target = $region37
    $region36: #{_forward_impl.1} parent=1 // pred_region
      _
    $region37: #{_forward_impl.1} parent=1 // pred_fallthru
      _
    %176 = vsyncpa [#allocation3], 1
    %177 = vsyncpa [#allocation5], 1

</llo_original>
